<compile_context>
chip_gen: v6e
topology: v6e:2x2x1
jax: 0.10.0
libtpu: 0.0.40
codegen_flags: <defaults>
</compile_context>

<pallas_src>
import jax
import jax.numpy as jnp
from jax.experimental import pallas as pl
from jax.experimental.pallas import tpu as pltpu

# TODO(synk): utl.squash_action depends on args; we assume it is tanh
#             (args.norm_actions_post_sampling=True). Set SQUASH=False otherwise.
SQUASH = True


def _make_kernel(se, ae, squash):
    """Kernel factory closing over the static encoder widths."""

    def kernel(lat_ref, st_ref, ac_ref,            # gridded inputs (features, TB)
               wsp_ref, wap_ref, encb_ref,         # fused encoders + packed biases
               w1_ref, b1_ref, w2_ref, b2_ref,     # MLP
               wo_ref, bo_ref,                     # head
               out_ref):                           # (1, TB) lane-dense output
        f32 = jnp.float32

        lat = lat_ref[...].astype(f32)             # (LD, TB)
        st = st_ref[...].astype(f32)               # (SD, TB)
        ac = ac_ref[...].astype(f32)               # (AD, TB)
        if squash:
            ac = jnp.tanh(ac)                      # f32 tanh (EUP), v5e-safe

        bs = encb_ref[0:se, :]                     # (SE, 1)
        ba = encb_ref[se:se + ae, :]               # (AE, 1)

        # Fused encoders: relu((Ws'.T) @ state.T + bs), same for actions.
        hns = jnp.maximum(
            jnp.dot(wsp_ref[...], st, preferred_element_type=f32) + bs, 0.0)   # (SE, TB)
        ha = jnp.maximum(
            jnp.dot(wap_ref[...], ac, preferred_element_type=f32) + ba, 0.0)   # (AE, TB)

        # concat([latent, hns, ha]) == sublane stack; single K=LD+SE+AE matmul.
        slab = jnp.concatenate([lat, hns, ha], axis=0)                          # (CI, TB)

        h = jnp.maximum(
            jnp.dot(w1_ref[...], slab, preferred_element_type=f32) + b1_ref[...], 0.0)
        h = jnp.maximum(
            jnp.dot(w2_ref[...], h, preferred_element_type=f32) + b2_ref[...], 0.0)

        # Head (out_dim == 1): VPU broadcast-mul + sublane reduce -> (1, TB)
        # lane-dense row; avoids a wasted N=1 MXU pass and masked stores.
        out = jnp.sum(h * wo_ref[...], axis=0, keepdims=True) + bo_ref[...]
        out_ref[...] = out.astype(out_ref.dtype)

    return kernel


def reward_decoder_forward(latent_rew, state, actions, s2r, a2r, params, *,
                           tile_b=512, squash=SQUASH,
                           input_dtype=jnp.bfloat16):
    """params: (in, out)-layout weight matrices and (1, out) bias rows."""
    B, LD = latent_rew.shape
    SD = state.shape[1]
    AD = actions.shape[1]
    SE = params["ws"].shape[1]
    AE = params["wa"].shape[1]
    L1 = params["w1"].shape[1]
    L2 = params["w2"].shape[1]
    CI = LD + SE + AE
    assert params["w1"].shape[0] == CI
    assert params["wo"].shape[1] == 1, "kernel implements pred_type='deterministic'"

    f32 = jnp.float32

    # Batch tile along lanes: multiple of 128, no larger than needed.
    TB = max(128, (min(int(tile_b), pl.cdiv(B, 128) * 128) // 128) * 128)
    Bp = pl.cdiv(B, TB) * TB
    grid = (Bp // TB,)

    def to_lanes(x):
        # (B, F) -> (F, Bp): features on sublanes, batch on lanes, zero-padded.
        xt = x.astype(input_dtype).T
        return jnp.pad(xt, ((0, 0), (0, Bp - B)))

    lat_t = to_lanes(latent_rew)
    st_t = to_lanes(state)
    ac_t = to_lanes(actions)

    # Algebraic fusion of the scalar clatent projections into the encoders:
    # (state @ s2r) @ Ws == state @ (s2r @ Ws); exact (relu applied afterwards).
    wsp_t = (s2r.astype(f32) @ params["ws"].astype(f32)).T          # (SE, SD)
    wap_t = (a2r.astype(f32) @ params["wa"].astype(f32)).T          # (AE, AD)
    enc_b = jnp.concatenate(
        [params["bs"].astype(f32).T, params["ba"].astype(f32).T], axis=0)  # (SE+AE, 1)

    w1_t = params["w1"].astype(f32).T                               # (L1, CI)
    b1_t = params["b1"].astype(f32).T                               # (L1, 1)
    w2_t = params["w2"].astype(f32).T                               # (L2, L1)
    b2_t = params["b2"].astype(f32).T                               # (L2, 1)
    wo_c = params["wo"].astype(f32)                                 # (L2, 1)
    bo = params["bo"].astype(f32).reshape(1, 1)                     # (1, 1)

    kernel = _make_kernel(SE, AE, squash)

    row = lambda i: (0, i)      # gridded along the batch (lane) axis
    const = lambda i: (0, 0)    # weights/biases: VMEM-resident across steps

    out_t = pl.pallas_call(
        kernel,
        grid=grid,
        in_specs=[
            pl.BlockSpec((LD, TB), row),
            pl.BlockSpec((SD, TB), row),
            pl.BlockSpec((AD, TB), row),
            pl.BlockSpec((SE, SD), const),
            pl.BlockSpec((AE, AD), const),
            pl.BlockSpec((SE + AE, 1), const),
            pl.BlockSpec((L1, CI), const),
            pl.BlockSpec((L1, 1), const),
            pl.BlockSpec((L2, L1), const),
            pl.BlockSpec((L2, 1), const),
            pl.BlockSpec((L2, 1), const),
            pl.BlockSpec((1, 1), const),
        ],
        out_specs=pl.BlockSpec((1, TB), row),
        out_shape=jax.ShapeDtypeStruct((1, Bp), f32),
        compiler_params=pltpu.CompilerParams(
            dimension_semantics=("parallel",),        # shards tiles across TCs on v7x
            vmem_limit_bytes=32 * 1024 * 1024,        # explicit (v7x: 64 MiB physical)
        ),
    )(lat_t, st_t, ac_t, wsp_t, wap_t, enc_b,
      w1_t, b1_t, w2_t, b2_t, wo_c, bo)

    return out_t[0, :B].reshape(B, 1)


def _reference(latent_rew, state, actions, s2r, a2r, params):
    """Pure-JAX f32 reference matching the PyTorch forward."""
    a = jnp.tanh(actions) if SQUASH else actions
    a = a @ a2r
    s = state @ s2r
    hns = jax.nn.relu(s @ params["ws"] + params["bs"])
    ha = jax.nn.relu(a @ params["wa"] + params["ba"])
    h = jnp.concatenate([latent_rew, hns, ha], axis=-1)
    h = jax.nn.relu(h @ params["w1"] + params["b1"])
    h = jax.nn.relu(h @ params["w2"] + params["b2"])
    return h @ params["wo"] + params["bo"]


if __name__ == "__main__":
    # Small shapes consistent with the module; B=300 with TB=128 exercises the
    # batch grid (3 tiles) and the tail-padding path.
    B = 300
    latent_dim = 32
    state_dim = 4
    action_dim = 4
    state_embed_dim = 16
    action_embed_dim = 8
    layers = (64, 64)
    out_dim = 1            # pred_type='deterministic'

    key = jax.random.PRNGKey(0)
    ks = jax.random.split(key, 16)

    def mk(k, shape, scale=0.1):
        return (scale * jax.random.normal(k, shape)).astype(jnp.float32)

    latent_rew = mk(ks[0], (B, latent_dim), 1.0)
    state = mk(ks[1], (B, state_dim), 1.0)
    actions = mk(ks[2], (B, action_dim), 1.0)
    s2r = mk(ks[3], (state_dim, 1), 1.0)
    a2r = mk(ks[4], (action_dim, 1), 1.0)

    curr_in = latent_dim + state_embed_dim + action_embed_dim
    params = {
        "ws": mk(ks[5], (1, state_embed_dim)),
        "bs": mk(ks[6], (1, state_embed_dim)),
        "wa": mk(ks[7], (1, action_embed_dim)),
        "ba": mk(ks[8], (1, action_embed_dim)),
        "w1": mk(ks[9], (curr_in, layers[0])),
        "b1": mk(ks[10], (1, layers[0])),
        "w2": mk(ks[11], (layers[0], layers[1])),
        "b2": mk(ks[12], (1, layers[1])),
        "wo": mk(ks[13], (layers[1], out_dim)),
        "bo": mk(ks[14], (1, out_dim)),
    }

    out = reward_decoder_forward(latent_rew, state, actions, s2r, a2r, params,
                                 tile_b=128)
    out = jax.block_until_ready(out)

    ref = _reference(latent_rew, state, actions, s2r, a2r, params)
    assert out.shape == (B, out_dim), out.shape
    # Inputs are streamed as bf16 (compute stays f32) -> compare against the
    # pure-f32 reference with a correspondingly loose tolerance.
    max_err = float(jnp.max(jnp.abs(out - ref)))
    assert jnp.allclose(out, ref, atol=5e-2, rtol=5e-2), max_err

    print("KERNEL_OK")
</pallas_src>

<mosaic_0001>
module attributes {stable_mosaic.version = 11 : i64} {
  func.func @kernel(%arg0: i32, %arg1: memref<32x128xbf16, #tpu.memory_space<vmem>>, %arg2: memref<4x128xbf16, #tpu.memory_space<vmem>>, %arg3: memref<4x128xbf16, #tpu.memory_space<vmem>>, %arg4: memref<16x4xf32, #tpu.memory_space<vmem>>, %arg5: memref<8x4xf32, #tpu.memory_space<vmem>>, %arg6: memref<24x1xf32, #tpu.memory_space<vmem>>, %arg7: memref<64x56xf32, #tpu.memory_space<vmem>>, %arg8: memref<64x1xf32, #tpu.memory_space<vmem>>, %arg9: memref<64x64xf32, #tpu.memory_space<vmem>>, %arg10: memref<64x1xf32, #tpu.memory_space<vmem>>, %arg11: memref<64x1xf32, #tpu.memory_space<vmem>>, %arg12: memref<1x1xf32, #tpu.memory_space<vmem>>, %arg13: memref<1x128xf32, #tpu.memory_space<vmem>>) attributes {dimension_semantics = [#tpu.dimension_semantics<parallel>], iteration_bounds = array<i64: 3>, scalar_prefetch = 0 : i64, scratch_operands = 0 : i64, tpu.core_type = #tpu.core_type<tc>, window_params = [{transform_indices = @transform_0, window_bounds = array<i64: 32, 128>}, {transform_indices = @transform_1, window_bounds = array<i64: 4, 128>}, {transform_indices = @transform_2, window_bounds = array<i64: 4, 128>}, {pipeline_mode = #tpu.pipeline_mode<synchronous>, transform_indices = @transform_3, window_bounds = array<i64: 16, 4>}, {pipeline_mode = #tpu.pipeline_mode<synchronous>, transform_indices = @transform_4, window_bounds = array<i64: 8, 4>}, {pipeline_mode = #tpu.pipeline_mode<synchronous>, transform_indices = @transform_5, window_bounds = array<i64: 24, 1>}, {pipeline_mode = #tpu.pipeline_mode<synchronous>, transform_indices = @transform_6, window_bounds = array<i64: 64, 56>}, {pipeline_mode = #tpu.pipeline_mode<synchronous>, transform_indices = @transform_7, window_bounds = array<i64: 64, 1>}, {pipeline_mode = #tpu.pipeline_mode<synchronous>, transform_indices = @transform_8, window_bounds = array<i64: 64, 64>}, {pipeline_mode = #tpu.pipeline_mode<synchronous>, transform_indices = @transform_9, window_bounds = array<i64: 64, 1>}, {pipeline_mode = #tpu.pipeline_mode<synchronous>, transform_indices = @transform_10, window_bounds = array<i64: 64, 1>}, {pipeline_mode = #tpu.pipeline_mode<synchronous>, transform_indices = @transform_11, window_bounds = array<i64: 1, 1>}, {transform_indices = @transform_12, window_bounds = array<i64: 1, 128>}]} {
    %c0 = arith.constant 0 : index
    %c0_0 = arith.constant 0 : index
    %0 = vector.load %arg1[%c0, %c0_0] : memref<32x128xbf16, #tpu.memory_space<vmem>>, vector<32x128xbf16>
    %1 = arith.extf %0 : vector<32x128xbf16> to vector<32x128xf32>
    %c0_1 = arith.constant 0 : index
    %c0_2 = arith.constant 0 : index
    %2 = vector.load %arg2[%c0_1, %c0_2] : memref<4x128xbf16, #tpu.memory_space<vmem>>, vector<4x128xbf16>
    %3 = arith.extf %2 : vector<4x128xbf16> to vector<4x128xf32>
    %c0_3 = arith.constant 0 : index
    %c0_4 = arith.constant 0 : index
    %4 = vector.load %arg3[%c0_3, %c0_4] : memref<4x128xbf16, #tpu.memory_space<vmem>>, vector<4x128xbf16>
    %5 = arith.extf %4 : vector<4x128xbf16> to vector<4x128xf32>
    %6 = math.tanh %5 : vector<4x128xf32>
    %c0_5 = arith.constant 0 : index
    %c0_6 = arith.constant 0 : index
    %7 = vector.load %arg6[%c0_5, %c0_6] : memref<24x1xf32, #tpu.memory_space<vmem>>, vector<16x1xf32>
    %c16 = arith.constant 16 : index
    %c0_7 = arith.constant 0 : index
    %8 = vector.load %arg6[%c16, %c0_7] : memref<24x1xf32, #tpu.memory_space<vmem>>, vector<8x1xf32>
    %c0_8 = arith.constant 0 : index
    %c0_9 = arith.constant 0 : index
    %9 = vector.load %arg4[%c0_8, %c0_9] : memref<16x4xf32, #tpu.memory_space<vmem>>, vector<16x4xf32>
    %cst = arith.constant dense<0.000000e+00> : vector<16x128xf32>
    %10 = tpu.matmul %9, %3, %cst {dimension_numbers = #tpu.dot_dimension_numbers<[1], [0], [0], [1], [0, 0, 1, 1], [], []>} : vector<16x4xf32>, vector<4x128xf32>, vector<16x128xf32> -> vector<16x128xf32>
    %11 = vector.broadcast %7 : vector<16x1xf32> to vector<16x128xf32>
    %12 = arith.addf %10, %11 : vector<16x128xf32>
    %cst_10 = arith.constant 0.000000e+00 : f32
    %13 = vector.broadcast %cst_10 : f32 to vector<16x128xf32>
    %14 = arith.maximumf %12, %13 : vector<16x128xf32>
    %c0_11 = arith.constant 0 : index
    %c0_12 = arith.constant 0 : index
    %15 = vector.load %arg5[%c0_11, %c0_12] : memref<8x4xf32, #tpu.memory_space<vmem>>, vector<8x4xf32>
    %cst_13 = arith.constant dense<0.000000e+00> : vector<8x128xf32>
    %16 = tpu.matmul %15, %6, %cst_13 {dimension_numbers = #tpu.dot_dimension_numbers<[1], [0], [0], [1], [0, 0, 1, 1], [], []>} : vector<8x4xf32>, vector<4x128xf32>, vector<8x128xf32> -> vector<8x128xf32>
    %17 = vector.broadcast %8 : vector<8x1xf32> to vector<8x128xf32>
    %18 = arith.addf %16, %17 : vector<8x128xf32>
    %cst_14 = arith.constant 0.000000e+00 : f32
    %19 = vector.broadcast %cst_14 : f32 to vector<8x128xf32>
    %20 = arith.maximumf %18, %19 : vector<8x128xf32>
    %21 = tpu.concatenate %1, %14, %20 in 0 : vector<32x128xf32>, vector<16x128xf32>, vector<8x128xf32> -> vector<56x128xf32>
    %c0_15 = arith.constant 0 : index
    %c0_16 = arith.constant 0 : index
    %22 = vector.load %arg7[%c0_15, %c0_16] : memref<64x56xf32, #tpu.memory_space<vmem>>, vector<64x56xf32>
    %cst_17 = arith.constant dense<0.000000e+00> : vector<64x128xf32>
    %23 = tpu.matmul %22, %21, %cst_17 {dimension_numbers = #tpu.dot_dimension_numbers<[1], [0], [0], [1], [0, 0, 1, 1], [], []>} : vector<64x56xf32>, vector<56x128xf32>, vector<64x128xf32> -> vector<64x128xf32>
    %c0_18 = arith.constant 0 : index
    %c0_19 = arith.constant 0 : index
    %24 = vector.load %arg8[%c0_18, %c0_19] : memref<64x1xf32, #tpu.memory_space<vmem>>, vector<64x1xf32>
    %25 = vector.broadcast %24 : vector<64x1xf32> to vector<64x128xf32>
    %26 = arith.addf %23, %25 : vector<64x128xf32>
    %cst_20 = arith.constant 0.000000e+00 : f32
    %27 = vector.broadcast %cst_20 : f32 to vector<64x128xf32>
    %28 = arith.maximumf %26, %27 : vector<64x128xf32>
    %c0_21 = arith.constant 0 : index
    %c0_22 = arith.constant 0 : index
    %29 = vector.load %arg9[%c0_21, %c0_22] : memref<64x64xf32, #tpu.memory_space<vmem>>, vector<64x64xf32>
    %cst_23 = arith.constant dense<0.000000e+00> : vector<64x128xf32>
    %30 = tpu.matmul %29, %28, %cst_23 {dimension_numbers = #tpu.dot_dimension_numbers<[1], [0], [0], [1], [0, 0, 1, 1], [], []>} : vector<64x64xf32>, vector<64x128xf32>, vector<64x128xf32> -> vector<64x128xf32>
    %c0_24 = arith.constant 0 : index
    %c0_25 = arith.constant 0 : index
    %31 = vector.load %arg10[%c0_24, %c0_25] : memref<64x1xf32, #tpu.memory_space<vmem>>, vector<64x1xf32>
    %32 = vector.broadcast %31 : vector<64x1xf32> to vector<64x128xf32>
    %33 = arith.addf %30, %32 : vector<64x128xf32>
    %cst_26 = arith.constant 0.000000e+00 : f32
    %34 = vector.broadcast %cst_26 : f32 to vector<64x128xf32>
    %35 = arith.maximumf %33, %34 : vector<64x128xf32>
    %c0_27 = arith.constant 0 : index
    %c0_28 = arith.constant 0 : index
    %36 = vector.load %arg11[%c0_27, %c0_28] : memref<64x1xf32, #tpu.memory_space<vmem>>, vector<64x1xf32>
    %37 = vector.broadcast %36 : vector<64x1xf32> to vector<64x128xf32>
    %38 = arith.mulf %35, %37 : vector<64x128xf32>
    %cst_29 = arith.constant dense<0.000000e+00> : vector<128xf32>
    %39 = vector.multi_reduction <add>, %38, %cst_29 [0] : vector<64x128xf32> to vector<128xf32>
    %40 = vector.shape_cast %39 : vector<128xf32> to vector<1x128xf32>
    %c0_30 = arith.constant 0 : index
    %c0_31 = arith.constant 0 : index
    %41 = vector.load %arg12[%c0_30, %c0_31] : memref<1x1xf32, #tpu.memory_space<vmem>>, vector<1x1xf32>
    %42 = vector.broadcast %41 : vector<1x1xf32> to vector<1x128xf32>
    %43 = arith.addf %40, %42 : vector<1x128xf32>
    %c0_32 = arith.constant 0 : index
    %c0_33 = arith.constant 0 : index
    %44 = vector.load %arg13[%c0_32, %c0_33] : memref<1x128xf32, #tpu.memory_space<vmem>>, vector<1x128xf32>
    tpu.vector_store %arg13[%c0_32, %c0_33], %43 {strides = array<i32>} : memref<1x128xf32, #tpu.memory_space<vmem>>, vector<1x128xf32>,
    return
  }
  func.func @transform_0(%arg0: i32) -> (i32, i32) {
    %c0_i32 = arith.constant 0 : i32
    %c0_i32_0 = arith.constant 0 : i32
    return %c0_i32, %arg0 : i32, i32
  }
  func.func @transform_1(%arg0: i32) -> (i32, i32) {
    %c0_i32 = arith.constant 0 : i32
    %c0_i32_0 = arith.constant 0 : i32
    return %c0_i32, %arg0 : i32, i32
  }
  func.func @transform_2(%arg0: i32) -> (i32, i32) {
    %c0_i32 = arith.constant 0 : i32
    %c0_i32_0 = arith.constant 0 : i32
    return %c0_i32, %arg0 : i32, i32
  }
  func.func @transform_3(%arg0: i32) -> (i32, i32) {
    %c0_i32 = arith.constant 0 : i32
    %c0_i32_0 = arith.constant 0 : i32
    %c0_i32_1 = arith.constant 0 : i32
    return %c0_i32, %c0_i32_0 : i32, i32
  }
  func.func @transform_4(%arg0: i32) -> (i32, i32) {
    %c0_i32 = arith.constant 0 : i32
    %c0_i32_0 = arith.constant 0 : i32
    %c0_i32_1 = arith.constant 0 : i32
    return %c0_i32, %c0_i32_0 : i32, i32
  }
  func.func @transform_5(%arg0: i32) -> (i32, i32) {
    %c0_i32 = arith.constant 0 : i32
    %c0_i32_0 = arith.constant 0 : i32
    %c0_i32_1 = arith.constant 0 : i32
    return %c0_i32, %c0_i32_0 : i32, i32
  }
  func.func @transform_6(%arg0: i32) -> (i32, i32) {
    %c0_i32 = arith.constant 0 : i32
    %c0_i32_0 = arith.constant 0 : i32
    %c0_i32_1 = arith.constant 0 : i32
    return %c0_i32, %c0_i32_0 : i32, i32
  }
  func.func @transform_7(%arg0: i32) -> (i32, i32) {
    %c0_i32 = arith.constant 0 : i32
    %c0_i32_0 = arith.constant 0 : i32
    %c0_i32_1 = arith.constant 0 : i32
    return %c0_i32, %c0_i32_0 : i32, i32
  }
  func.func @transform_8(%arg0: i32) -> (i32, i32) {
    %c0_i32 = arith.constant 0 : i32
    %c0_i32_0 = arith.constant 0 : i32
    %c0_i32_1 = arith.constant 0 : i32
    return %c0_i32, %c0_i32_0 : i32, i32
  }
  func.func @transform_9(%arg0: i32) -> (i32, i32) {
    %c0_i32 = arith.constant 0 : i32
    %c0_i32_0 = arith.constant 0 : i32
    %c0_i32_1 = arith.constant 0 : i32
    return %c0_i32, %c0_i32_0 : i32, i32
  }
  func.func @transform_10(%arg0: i32) -> (i32, i32) {
    %c0_i32 = arith.constant 0 : i32
    %c0_i32_0 = arith.constant 0 : i32
    %c0_i32_1 = arith.constant 0 : i32
    return %c0_i32, %c0_i32_0 : i32, i32
  }
  func.func @transform_11(%arg0: i32) -> (i32, i32) {
    %c0_i32 = arith.constant 0 : i32
    %c0_i32_0 = arith.constant 0 : i32
    %c0_i32_1 = arith.constant 0 : i32
    return %c0_i32, %c0_i32_0 : i32, i32
  }
  func.func @transform_12(%arg0: i32) -> (i32, i32) {
    %c0_i32 = arith.constant 0 : i32
    %c0_i32_0 = arith.constant 0 : i32
    return %c0_i32, %arg0 : i32, i32
  }
}

</mosaic_0001>

<llo_original>
// kernel: tpu_custom_call.1
$region0: #{tpu_custom_call.1}
  #allocation0 [shape = 'u32[]', space=smem, size = 0x4, offset = 0x4, fixed_abs, tag = 'smem constant byte address 0x4 - core index']
  #allocation1 [shape = 'u32[144,128]{1,0:T(1,128)}', space=vmem, size = 0x12000, scoped, tag = 'internal scratch']
  #allocation2 [shape = 'f32[1,1]{1,0:T(1,128)S(1)}', space=vmem, size = 0x200, scoped, tag = 'scoped memory for tpu_custom_call.1']
  %s0 = inlined_call_operand.vmem [shape: bf16[32,384], index: 0, kind: input, shape index: {}]
  %s1 = inlined_call_operand.vmem [shape: bf16[4,384], index: 1, kind: input, shape index: {}]
  %s2 = inlined_call_operand.vmem [shape: bf16[4,384], index: 2, kind: input, shape index: {}]
  %s3 = inlined_call_operand.vmem [shape: f32[16,4], index: 3, kind: input, shape index: {}]
  %s4 = inlined_call_operand.vmem [shape: f32[8,4], index: 4, kind: input, shape index: {}]
  %s5 = inlined_call_operand.vmem [shape: f32[24,1], index: 5, kind: input, shape index: {}]
  %s6 = inlined_call_operand.vmem [shape: f32[64,56], index: 6, kind: input, shape index: {}]
  %s7 = inlined_call_operand.vmem [shape: f32[64,1], index: 7, kind: input, shape index: {}]
  %s8 = inlined_call_operand.vmem [shape: f32[64,64], index: 8, kind: input, shape index: {}]
  %s9 = inlined_call_operand.vmem [shape: f32[64,1], index: 9, kind: input, shape index: {}]
  %s10 = inlined_call_operand.vmem [shape: f32[64,1], index: 10, kind: input, shape index: {}]
  %s11 = inlined_call_operand.<no memory space> [shape: f32[1,1], index: 11, kind: input, shape index: {}]
  %s12 = inlined_call_operand.hbm [shape: f32[1,384], index: 12, kind: output, shape index: {}]
  %s13 = sld [smem:[#allocation0]]
  $region122: #{tpu_custom_call.1} parent=0
    _
  %s15 = ssub.s32 1, %s13
  %s16 = scalar_select 0, %s15, %s13
  %v17 = vstv %s11
  %18 = vst [vmem:[#allocation2] sm:$0x1] %v17
  $region1: #{tpu_custom_call.1} parent=0
    #allocation3 [shape = 'u8[16384]{0}', space=vmem, size = 0x4000, scoped, tag = 'input window, operand 0']
    #allocation4 [shape = 'u8[1024]{0}', space=vmem, size = 0x400, scoped, tag = 'output window, operand 0']
    #allocation5 [shape = 's32[2]{0}', space=sflag, size = 0x8, scoped, tag = 'scoped memory for tpu_custom_call.1']
    %19 = vsyncpa [#allocation5], 0
    %s20 = scalar_lea.sflag [#allocation5], 1
    %21 = vsyncpa %s20, 0
    loop: start=0, step=1, limit=5
    $region2: #{tpu_custom_call.1} parent=1 // loop_pre_header
      _
    $region3: #{tpu_custom_call.1} parent=1 // loop_header
      %s23 = sphi 0, %s27
      %p24 = scmp.ge.s32.totalorder %s23, 5
      %s33 = sphi 0, %s35
      %s36 = sphi 0, %s33
      %s37 = sphi 0, %s36
      %s53 = sphi 0, %s37
      %s59 = sphi 0, %s61
      %s62 = sphi 0, %s59
      %s63 = sphi 0, %s62
      %s79 = sphi 0, %s63
      %s85 = sphi 0, %s87
      %s88 = sphi 0, %s85
      %s89 = sphi 0, %s88
      %s105 = sphi 0, %s89
      %s109 = sphi 0, %s109
      %s111 = sphi 0, %s109
      %s112 = sphi 0, %s111
      %s126 = sphi 0, %s112
      %s130 = sphi 0, %s130
      %s132 = sphi 0, %s130
      %s133 = sphi 0, %s132
      %s147 = sphi 0, %s133
      %s151 = sphi 0, %s151
      %s153 = sphi 0, %s151
      %s154 = sphi 0, %s153
      %s168 = sphi 0, %s154
      %s172 = sphi 0, %s172
      %s174 = sphi 0, %s172
      %s175 = sphi 0, %s174
      %s189 = sphi 0, %s175
      %s193 = sphi 0, %s193
      %s195 = sphi 0, %s193
      %s196 = sphi 0, %s195
      %s210 = sphi 0, %s196
      %s214 = sphi 0, %s214
      %s216 = sphi 0, %s214
      %s217 = sphi 0, %s216
      %s231 = sphi 0, %s217
      %s235 = sphi 0, %s235
      %s237 = sphi 0, %s235
      %s238 = sphi 0, %s237
      %s252 = sphi 0, %s238
      %s256 = sphi 0, %s256
      %s258 = sphi 0, %s256
      %s259 = sphi 0, %s258
      %s273 = sphi 0, %s259
      %s277 = sphi 0, %s277
      %s279 = sphi 0, %s277
      %s280 = sphi 0, %s279
      %s294 = sphi 0, %s280
      %s300 = sphi 0, %s302
      %s303 = sphi 0, %s300
      %s304 = sphi 0, %s303
      %s320 = sphi 0, %s304
    $region4: #{tpu_custom_call.1} parent=1 // loop_header_branch
      %26 = sbr.rel (%p24) target = $region8
    $region5: #{tpu_custom_call.1} parent=1 // loop_body
      %s28 = ssub.s32 %s23, 1
      %s29 = ssub.s32 %s23, 2
      %s30 = sadd.s32 %s23, 1
      %s31 = ssub.s32 %s23, %s30
      %p32 = scmp.eq.s32.totalorder %s31, 0
      %s34 = sadd.s32 %s33, 1
      %s35 = scalar_select %p32, %s33, %s34
      %p38 = pneg %p32
      %p39 = scmp.eq.s32.totalorder %s23, 2
      %p40 = por %p38, %p39
      %p41 = scmp.ne.s32.totalorder %s33, %s36
      %p42 = scmp.eq.s32.totalorder %s23, 0
      %p43 = por %p41, %p42
      %p44 = scmp.ne.s32.totalorder %s33, %s36
      %p45 = scmp.eq.s32.totalorder %s28, 2
      %p46 = por %p44, %p45
      %p47 = scmp.ne.s32.totalorder %s36, %s37
      %p48 = scmp.eq.s32.totalorder %s28, 0
      %p49 = por %p47, %p48
      %p50 = scmp.ne.s32.totalorder %s36, %s37
      %p51 = scmp.eq.s32.totalorder %s29, 2
      %p52 = por %p50, %p51
      %p54 = scmp.ne.s32.totalorder %s37, %s53
      %p55 = scmp.eq.s32.totalorder %s29, 0
      %p56 = por %p54, %p55
      %s57 = ssub.s32 %s23, %s30
      %p58 = scmp.eq.s32.totalorder %s57, 0
      %s60 = sadd.s32 %s59, 1
      %s61 = scalar_select %p58, %s59, %s60
      %p64 = pneg %p58
      %p65 = scmp.eq.s32.totalorder %s23, 2
      %p66 = por %p64, %p65
      %p67 = scmp.ne.s32.totalorder %s59, %s62
      %p68 = scmp.eq.s32.totalorder %s23, 0
      %p69 = por %p67, %p68
      %p70 = scmp.ne.s32.totalorder %s59, %s62
      %p71 = scmp.eq.s32.totalorder %s28, 2
      %p72 = por %p70, %p71
      %p73 = scmp.ne.s32.totalorder %s62, %s63
      %p74 = scmp.eq.s32.totalorder %s28, 0
      %p75 = por %p73, %p74
      %p76 = scmp.ne.s32.totalorder %s62, %s63
      %p77 = scmp.eq.s32.totalorder %s29, 2
      %p78 = por %p76, %p77
      %p80 = scmp.ne.s32.totalorder %s63, %s79
      %p81 = scmp.eq.s32.totalorder %s29, 0
      %p82 = por %p80, %p81
      %s83 = ssub.s32 %s23, %s30
      %p84 = scmp.eq.s32.totalorder %s83, 0
      %s86 = sadd.s32 %s85, 1
      %s87 = scalar_select %p84, %s85, %s86
      %p90 = pneg %p84
      %p91 = scmp.eq.s32.totalorder %s23, 2
      %p92 = por %p90, %p91
      %p93 = scmp.ne.s32.totalorder %s85, %s88
      %p94 = scmp.eq.s32.totalorder %s23, 0
      %p95 = por %p93, %p94
      %p96 = scmp.ne.s32.totalorder %s85, %s88
      %p97 = scmp.eq.s32.totalorder %s28, 2
      %p98 = por %p96, %p97
      %p99 = scmp.ne.s32.totalorder %s88, %s89
      %p100 = scmp.eq.s32.totalorder %s28, 0
      %p101 = por %p99, %p100
      %p102 = scmp.ne.s32.totalorder %s88, %s89
      %p103 = scmp.eq.s32.totalorder %s29, 2
      %p104 = por %p102, %p103
      %p106 = scmp.ne.s32.totalorder %s89, %s105
      %p107 = scmp.eq.s32.totalorder %s29, 0
      %p108 = por %p106, %p107
      %s110 = sadd.s32 %s109, 1
      %p113 = scmp.eq.s32.totalorder %s23, 2
      %p114 = scmp.ne.s32.totalorder %s109, %s111
      %p115 = scmp.eq.s32.totalorder %s23, 0
      %p116 = por %p114, %p115
      %p117 = scmp.ne.s32.totalorder %s109, %s111
      %p118 = scmp.eq.s32.totalorder %s28, 2
      %p119 = por %p117, %p118
      %p120 = scmp.ne.s32.totalorder %s111, %s112
      %p121 = scmp.eq.s32.totalorder %s28, 0
      %p122 = por %p120, %p121
      %p123 = scmp.ne.s32.totalorder %s111, %s112
      %p124 = scmp.eq.s32.totalorder %s29, 2
      %p125 = por %p123, %p124
      %p127 = scmp.ne.s32.totalorder %s112, %s126
      %p128 = scmp.eq.s32.totalorder %s29, 0
      %p129 = por %p127, %p128
      %s131 = sadd.s32 %s130, 1
      %p134 = scmp.eq.s32.totalorder %s23, 2
      %p135 = scmp.ne.s32.totalorder %s130, %s132
      %p136 = scmp.eq.s32.totalorder %s23, 0
      %p137 = por %p135, %p136
      %p138 = scmp.ne.s32.totalorder %s130, %s132
      %p139 = scmp.eq.s32.totalorder %s28, 2
      %p140 = por %p138, %p139
      %p141 = scmp.ne.s32.totalorder %s132, %s133
      %p142 = scmp.eq.s32.totalorder %s28, 0
      %p143 = por %p141, %p142
      %p144 = scmp.ne.s32.totalorder %s132, %s133
      %p145 = scmp.eq.s32.totalorder %s29, 2
      %p146 = por %p144, %p145
      %p148 = scmp.ne.s32.totalorder %s133, %s147
      %p149 = scmp.eq.s32.totalorder %s29, 0
      %p150 = por %p148, %p149
      %s152 = sadd.s32 %s151, 1
      %p155 = scmp.eq.s32.totalorder %s23, 2
      %p156 = scmp.ne.s32.totalorder %s151, %s153
      %p157 = scmp.eq.s32.totalorder %s23, 0
      %p158 = por %p156, %p157
      %p159 = scmp.ne.s32.totalorder %s151, %s153
      %p160 = scmp.eq.s32.totalorder %s28, 2
      %p161 = por %p159, %p160
      %p162 = scmp.ne.s32.totalorder %s153, %s154
      %p163 = scmp.eq.s32.totalorder %s28, 0
      %p164 = por %p162, %p163
      %p165 = scmp.ne.s32.totalorder %s153, %s154
      %p166 = scmp.eq.s32.totalorder %s29, 2
      %p167 = por %p165, %p166
      %p169 = scmp.ne.s32.totalorder %s154, %s168
      %p170 = scmp.eq.s32.totalorder %s29, 0
      %p171 = por %p169, %p170
      %s173 = sadd.s32 %s172, 1
      %p176 = scmp.eq.s32.totalorder %s23, 2
      %p177 = scmp.ne.s32.totalorder %s172, %s174
      %p178 = scmp.eq.s32.totalorder %s23, 0
      %p179 = por %p177, %p178
      %p180 = scmp.ne.s32.totalorder %s172, %s174
      %p181 = scmp.eq.s32.totalorder %s28, 2
      %p182 = por %p180, %p181
      %p183 = scmp.ne.s32.totalorder %s174, %s175
      %p184 = scmp.eq.s32.totalorder %s28, 0
      %p185 = por %p183, %p184
      %p186 = scmp.ne.s32.totalorder %s174, %s175
      %p187 = scmp.eq.s32.totalorder %s29, 2
      %p188 = por %p186, %p187
      %p190 = scmp.ne.s32.totalorder %s175, %s189
      %p191 = scmp.eq.s32.totalorder %s29, 0
      %p192 = por %p190, %p191
      %s194 = sadd.s32 %s193, 1
      %p197 = scmp.eq.s32.totalorder %s23, 2
      %p198 = scmp.ne.s32.totalorder %s193, %s195
      %p199 = scmp.eq.s32.totalorder %s23, 0
      %p200 = por %p198, %p199
      %p201 = scmp.ne.s32.totalorder %s193, %s195
      %p202 = scmp.eq.s32.totalorder %s28, 2
      %p203 = por %p201, %p202
      %p204 = scmp.ne.s32.totalorder %s195, %s196
      %p205 = scmp.eq.s32.totalorder %s28, 0
      %p206 = por %p204, %p205
      %p207 = scmp.ne.s32.totalorder %s195, %s196
      %p208 = scmp.eq.s32.totalorder %s29, 2
      %p209 = por %p207, %p208
      %p211 = scmp.ne.s32.totalorder %s196, %s210
      %p212 = scmp.eq.s32.totalorder %s29, 0
      %p213 = por %p211, %p212
      %s215 = sadd.s32 %s214, 1
      %p218 = scmp.eq.s32.totalorder %s23, 2
      %p219 = scmp.ne.s32.totalorder %s214, %s216
      %p220 = scmp.eq.s32.totalorder %s23, 0
      %p221 = por %p219, %p220
      %p222 = scmp.ne.s32.totalorder %s214, %s216
      %p223 = scmp.eq.s32.totalorder %s28, 2
      %p224 = por %p222, %p223
      %p225 = scmp.ne.s32.totalorder %s216, %s217
      %p226 = scmp.eq.s32.totalorder %s28, 0
      %p227 = por %p225, %p226
      %p228 = scmp.ne.s32.totalorder %s216, %s217
      %p229 = scmp.eq.s32.totalorder %s29, 2
      %p230 = por %p228, %p229
      %p232 = scmp.ne.s32.totalorder %s217, %s231
      %p233 = scmp.eq.s32.totalorder %s29, 0
      %p234 = por %p232, %p233
      %s236 = sadd.s32 %s235, 1
      %p239 = scmp.eq.s32.totalorder %s23, 2
      %p240 = scmp.ne.s32.totalorder %s235, %s237
      %p241 = scmp.eq.s32.totalorder %s23, 0
      %p242 = por %p240, %p241
      %p243 = scmp.ne.s32.totalorder %s235, %s237
      %p244 = scmp.eq.s32.totalorder %s28, 2
      %p245 = por %p243, %p244
      %p246 = scmp.ne.s32.totalorder %s237, %s238
      %p247 = scmp.eq.s32.totalorder %s28, 0
      %p248 = por %p246, %p247
      %p249 = scmp.ne.s32.totalorder %s237, %s238
      %p250 = scmp.eq.s32.totalorder %s29, 2
      %p251 = por %p249, %p250
      %p253 = scmp.ne.s32.totalorder %s238, %s252
      %p254 = scmp.eq.s32.totalorder %s29, 0
      %p255 = por %p253, %p254
      %s257 = sadd.s32 %s256, 1
      %p260 = scmp.eq.s32.totalorder %s23, 2
      %p261 = scmp.ne.s32.totalorder %s256, %s258
      %p262 = scmp.eq.s32.totalorder %s23, 0
      %p263 = por %p261, %p262
      %p264 = scmp.ne.s32.totalorder %s256, %s258
      %p265 = scmp.eq.s32.totalorder %s28, 2
      %p266 = por %p264, %p265
      %p267 = scmp.ne.s32.totalorder %s258, %s259
      %p268 = scmp.eq.s32.totalorder %s28, 0
      %p269 = por %p267, %p268
      %p270 = scmp.ne.s32.totalorder %s258, %s259
      %p271 = scmp.eq.s32.totalorder %s29, 2
      %p272 = por %p270, %p271
      %p274 = scmp.ne.s32.totalorder %s259, %s273
      %p275 = scmp.eq.s32.totalorder %s29, 0
      %p276 = por %p274, %p275
      %s278 = sadd.s32 %s277, 1
      %p281 = scmp.eq.s32.totalorder %s23, 2
      %p282 = scmp.ne.s32.totalorder %s277, %s279
      %p283 = scmp.eq.s32.totalorder %s23, 0
      %p284 = por %p282, %p283
      %p285 = scmp.ne.s32.totalorder %s277, %s279
      %p286 = scmp.eq.s32.totalorder %s28, 2
      %p287 = por %p285, %p286
      %p288 = scmp.ne.s32.totalorder %s279, %s280
      %p289 = scmp.eq.s32.totalorder %s28, 0
      %p290 = por %p288, %p289
      %p291 = scmp.ne.s32.totalorder %s279, %s280
      %p292 = scmp.eq.s32.totalorder %s29, 2
      %p293 = por %p291, %p292
      %p295 = scmp.ne.s32.totalorder %s280, %s294
      %p296 = scmp.eq.s32.totalorder %s29, 0
      %p297 = por %p295, %p296
      %s298 = ssub.s32 %s23, %s30
      %p299 = scmp.eq.s32.totalorder %s298, 0
      %s301 = sadd.s32 %s300, 1
      %s302 = scalar_select %p299, %s300, %s301
      %p305 = pneg %p299
      %p306 = scmp.eq.s32.totalorder %s23, 2
      %p307 = por %p305, %p306
      %p308 = scmp.ne.s32.totalorder %s300, %s303
      %p309 = scmp.eq.s32.totalorder %s23, 0
      %p310 = por %p308, %p309
      %p311 = scmp.ne.s32.totalorder %s300, %s303
      %p312 = scmp.eq.s32.totalorder %s28, 2
      %p313 = por %p311, %p312
      %p314 = scmp.ne.s32.totalorder %s303, %s304
      %p315 = scmp.eq.s32.totalorder %s28, 0
      %p316 = por %p314, %p315
      %p317 = scmp.ne.s32.totalorder %s303, %s304
      %p318 = scmp.eq.s32.totalorder %s29, 2
      %p319 = por %p317, %p318
      %p321 = scmp.ne.s32.totalorder %s304, %s320
      %p322 = scmp.eq.s32.totalorder %s29, 0
      %p323 = por %p321, %p322
      %p324 = scmp.le.s32.totalorder 1, %s23
      %p325 = scmp.lt.s32.totalorder %s23, 4
      %p326 = pnand %p324, %p325
      %p327 = pneg %p326
      // Predicated region
      $region9: #{tpu_custom_call.1} parent=5 // pred_check
        _
      $region10: #{tpu_custom_call.1} parent=5 // pred_check_branch
        %329 = sbr.rel (%p326) target = $region12
      $region11: #{tpu_custom_call.1} parent=5 // pred_region
        %s330 = ssub.s32 %s23, 1
        // Predicated region
        $region13: #{tpu_custom_call.1} parent=11 // pred_check
          %p331 = pneg %p122
        $region14: #{tpu_custom_call.1} parent=11 // pred_check_branch
          %333 = sbr.rel (%p331) target = $region16
        $region15: #{tpu_custom_call.1} parent=11 // pred_region
          _
        $region16: #{tpu_custom_call.1} parent=11 // pred_fallthru
          _
        // Predicated region
        $region17: #{tpu_custom_call.1} parent=11 // pred_check
          %p334 = pneg %p143
        $region18: #{tpu_custom_call.1} parent=11 // pred_check_branch
          %336 = sbr.rel (%p334) target = $region20
        $region19: #{tpu_custom_call.1} parent=11 // pred_region
          _
        $region20: #{tpu_custom_call.1} parent=11 // pred_fallthru
          _
        // Predicated region
        $region21: #{tpu_custom_call.1} parent=11 // pred_check
          %p337 = pneg %p164
        $region22: #{tpu_custom_call.1} parent=11 // pred_check_branch
          %339 = sbr.rel (%p337) target = $region24
        $region23: #{tpu_custom_call.1} parent=11 // pred_region
          _
        $region24: #{tpu_custom_call.1} parent=11 // pred_fallthru
          _
        // Predicated region
        $region25: #{tpu_custom_call.1} parent=11 // pred_check
          %p340 = pneg %p185
        $region26: #{tpu_custom_call.1} parent=11 // pred_check_branch
          %342 = sbr.rel (%p340) target = $region28
        $region27: #{tpu_custom_call.1} parent=11 // pred_region
          _
        $region28: #{tpu_custom_call.1} parent=11 // pred_fallthru
          _
        // Predicated region
        $region29: #{tpu_custom_call.1} parent=11 // pred_check
          %p343 = pneg %p206
        $region30: #{tpu_custom_call.1} parent=11 // pred_check_branch
          %345 = sbr.rel (%p343) target = $region32
        $region31: #{tpu_custom_call.1} parent=11 // pred_region
          _
        $region32: #{tpu_custom_call.1} parent=11 // pred_fallthru
          _
        // Predicated region
        $region33: #{tpu_custom_call.1} parent=11 // pred_check
          %p346 = pneg %p227
        $region34: #{tpu_custom_call.1} parent=11 // pred_check_branch
          %348 = sbr.rel (%p346) target = $region36
        $region35: #{tpu_custom_call.1} parent=11 // pred_region
          _
        $region36: #{tpu_custom_call.1} parent=11 // pred_fallthru
          _
        // Predicated region
        $region37: #{tpu_custom_call.1} parent=11 // pred_check
          %p349 = pneg %p248
        $region38: #{tpu_custom_call.1} parent=11 // pred_check_branch
          %351 = sbr.rel (%p349) target = $region40
        $region39: #{tpu_custom_call.1} parent=11 // pred_region
          _
        $region40: #{tpu_custom_call.1} parent=11 // pred_fallthru
          _
        // Predicated region
        $region41: #{tpu_custom_call.1} parent=11 // pred_check
          %p352 = pneg %p269
        $region42: #{tpu_custom_call.1} parent=11 // pred_check_branch
          %354 = sbr.rel (%p352) target = $region44
        $region43: #{tpu_custom_call.1} parent=11 // pred_region
          _
        $region44: #{tpu_custom_call.1} parent=11 // pred_fallthru
          _
        // Predicated region
        $region45: #{tpu_custom_call.1} parent=11 // pred_check
          %p355 = pneg %p290
        $region46: #{tpu_custom_call.1} parent=11 // pred_check_branch
          %357 = sbr.rel (%p355) target = $region48
        $region47: #{tpu_custom_call.1} parent=11 // pred_region
          _
        $region48: #{tpu_custom_call.1} parent=11 // pred_fallthru
          _
      $region12: #{tpu_custom_call.1} parent=5 // pred_fallthru
        _
      %p358 = scmp.lt.s32.totalorder %s23, 3
      // Predicated region
      $region49: #{tpu_custom_call.1} parent=5 // pred_check
        %p359 = pneg %p358
      $region50: #{tpu_custom_call.1} parent=5 // pred_check_branch
        %361 = sbr.rel (%p359) target = $region52
      $region51: #{tpu_custom_call.1} parent=5 // pred_region
        // Predicated region
        $region53: #{tpu_custom_call.1} parent=51 // pred_check
          %p362 = pneg %p43
        $region54: #{tpu_custom_call.1} parent=51 // pred_check_branch
          %364 = sbr.rel (%p362) target = $region56
        $region55: #{tpu_custom_call.1} parent=51 // pred_region
          %s365 = sand.u32 %s33, 1
          %s366 = sand.u32 %s33, 1
          %s367 = smul.addr %s366, 16
          %s368 = scalar_lea.vmem [#allocation3], %s367
          %s369 = smul.addr %s23, 4
          %s370 = scalar_lea.vmem %s0, %s369
          // Predicated region
          $region57: #{tpu_custom_call.1} parent=55 // pred_check
            _
          $region58: #{tpu_custom_call.1} parent=55 // pred_check_branch
            %372 = sbr.rel (0) target = $region60
          $region59: #{tpu_custom_call.1} parent=55 // pred_region
            // Predicated region
            $region61: #{tpu_custom_call.1} parent=59 // pred_check
              _
            $region62: #{tpu_custom_call.1} parent=59 // pred_check_branch
              %374 = sbr.rel target = $region64
            $region63: #{tpu_custom_call.1} parent=59 // pred_region
              // Predicated region
              $region76: #{tpu_custom_call.1} parent=63 // pred_check
                _
              $region77: #{tpu_custom_call.1} parent=63 // pred_check_branch
                %396 = sbr.rel (0) target = $region79
              $region78: #{tpu_custom_call.1} parent=63 // pred_region
                loop: start=0, step=1, limit=1
                $region80: #{tpu_custom_call.1} parent=78 // loop_pre_header
                  _
                $region81: #{tpu_custom_call.1} parent=78 // loop_header
                  %s398 = sphi 0, %s402
                  %p399 = scmp.ge.s32.totalorder %s398, 1
                  %s403 = sphi %s370, %s370
                  %s404 = sphi %s368, %s368
                $region82: #{tpu_custom_call.1} parent=78 // loop_header_branch
                  %401 = sbr.rel (%p399) target = $region86
                $region83: #{tpu_custom_call.1} parent=78 // loop_body
                  _
                $region84: #{tpu_custom_call.1} parent=78 // loop_footer
                  %s402 = sadd.s32 1, %s398
                $region85: #{tpu_custom_call.1} parent=78 // loop_footer_branch
                  %397 = sbr.rel target = $region81
                $region86: #{tpu_custom_call.1} parent=78 // loop_exit
                  _
                %s406 = ssub.s32 16, 1
                loop: start=0, step=1, limit=1
                $region87: #{tpu_custom_call.1} parent=78 // loop_pre_header
                  _
                $region88: #{tpu_custom_call.1} parent=78 // loop_header
                  %s408 = sphi 0, %s412
                  %p409 = scmp.ge.s32.totalorder %s408, 1
                  %s413 = sphi %s370, %s370
                  %s414 = sphi %s368, %s368
                $region89: #{tpu_custom_call.1} parent=78 // loop_header_branch
                  %411 = sbr.rel (%p409) target = $region93
                $region90: #{tpu_custom_call.1} parent=78 // loop_body
                  %v415 = vld [vmem:[%s413] sm:%s406]
                  %416 = vst [vmem:[%s414] sm:%s406] %v415
                  %v417 = vld [vmem:[%s413 + $0xc] sm:%s406]
                  %418 = vst [vmem:[%s414 + $0x4] sm:%s406] %v417
                  %v419 = vld [vmem:[%s413 + $0x18] sm:%s406]
                  %420 = vst [vmem:[%s414 + $0x8] sm:%s406] %v419
                  %v421 = vld [vmem:[%s413 + $0x24] sm:%s406]
                  %422 = vst [vmem:[%s414 + $0xc] sm:%s406] %v421
                $region91: #{tpu_custom_call.1} parent=78 // loop_footer
                  %s412 = sadd.s32 1, %s408
                $region92: #{tpu_custom_call.1} parent=78 // loop_footer_branch
                  %407 = sbr.rel target = $region88
                $region93: #{tpu_custom_call.1} parent=78 // loop_exit
                  _
              $region79: #{tpu_custom_call.1} parent=63 // pred_fallthru
                _
            $region64: #{tpu_custom_call.1} parent=59 // pred_fallthru
              _
            // Predicated region
            $region65: #{tpu_custom_call.1} parent=59 // pred_check
              _
            $region66: #{tpu_custom_call.1} parent=59 // pred_check_branch
              %376 = sbr.rel (0) target = $region68
            $region67: #{tpu_custom_call.1} parent=59 // pred_region
              %s378 = ssub.s32 16, 1
              loop: start=0, step=1, limit=1
              $region69: #{tpu_custom_call.1} parent=67 // loop_pre_header
                _
              $region70: #{tpu_custom_call.1} parent=67 // loop_header
                %s380 = sphi 0, %s384
                %p381 = scmp.ge.s32.totalorder %s380, 1
                %s385 = sphi %s370, %s370
                %s386 = sphi %s368, %s368
              $region71: #{tpu_custom_call.1} parent=67 // loop_header_branch
                %383 = sbr.rel (%p381) target = $region75
              $region72: #{tpu_custom_call.1} parent=67 // loop_body
                %v387 = vld [vmem:[%s385] sm:%s378]
                %388 = vst [vmem:[%s386] sm:%s378] %v387
                %v389 = vld [vmem:[%s385 + $0xc] sm:%s378]
                %390 = vst [vmem:[%s386 + $0x4] sm:%s378] %v389
                %v391 = vld [vmem:[%s385 + $0x18] sm:%s378]
                %392 = vst [vmem:[%s386 + $0x8] sm:%s378] %v391
                %v393 = vld [vmem:[%s385 + $0x24] sm:%s378]
                %394 = vst [vmem:[%s386 + $0xc] sm:%s378] %v393
              $region73: #{tpu_custom_call.1} parent=67 // loop_footer
                %s384 = sadd.s32 1, %s380
              $region74: #{tpu_custom_call.1} parent=67 // loop_footer_branch
                %379 = sbr.rel target = $region70
              $region75: #{tpu_custom_call.1} parent=67 // loop_exit
                _
            $region68: #{tpu_custom_call.1} parent=59 // pred_fallthru
              _
          $region60: #{tpu_custom_call.1} parent=55 // pred_fallthru
            _
          %423 = vnop
        $region56: #{tpu_custom_call.1} parent=51 // pred_fallthru
          _
        // Predicated region
        $region94: #{tpu_custom_call.1} parent=51 // pred_check
          %p424 = pneg %p69
        $region95: #{tpu_custom_call.1} parent=51 // pred_check_branch
          %426 = sbr.rel (%p424) target = $region97
        $region96: #{tpu_custom_call.1} parent=51 // pred_region
          %p427 = scmp.lt.s32.totalorder %s23, 2
          %s428 = scalar_select %p427, %s23, 2
          %s429 = smul.addr %s428, 2
          %s430 = scalar_lea.vmem %s1, %s429
        $region97: #{tpu_custom_call.1} parent=51 // pred_fallthru
          _
        // Predicated region
        $region98: #{tpu_custom_call.1} parent=51 // pred_check
          %p431 = pneg %p95
        $region99: #{tpu_custom_call.1} parent=51 // pred_check_branch
          %433 = sbr.rel (%p431) target = $region101
        $region100: #{tpu_custom_call.1} parent=51 // pred_region
          %p434 = scmp.lt.s32.totalorder %s23, 2
          %s435 = scalar_select %p434, %s23, 2
          %s436 = smul.addr %s435, 2
          %s437 = scalar_lea.vmem %s2, %s436
        $region101: #{tpu_custom_call.1} parent=51 // pred_fallthru
          _
      $region52: #{tpu_custom_call.1} parent=5 // pred_fallthru
        _
      %p438 = scmp.le.s32.totalorder 1, %s23
      %p439 = scmp.lt.s32.totalorder %s23, 4
      %p440 = pnand %p438, %p439
      %p441 = pneg %p440
      // Predicated region
      $region102: #{tpu_custom_call.1} parent=5 // pred_check
        _
      $region103: #{tpu_custom_call.1} parent=5 // pred_check_branch
        %443 = sbr.rel (%p440) target = $region105
      $region104: #{tpu_custom_call.1} parent=5 // pred_region
        %s444 = ssub.s32 %s23, 1
        %s445 = sand.u32 %s36, 1
        %s446 = sand.u32 %s36, 1
        %s447 = smul.addr %s446, 16
        %s448 = scalar_lea.vmem [#allocation3], %s447
        // Predicated region
        $region106: #{tpu_custom_call.1} parent=104 // pred_check
          %p449 = pneg %p49
        $region107: #{tpu_custom_call.1} parent=104 // pred_check_branch
          %451 = sbr.rel (%p449) target = $region109
        $region108: #{tpu_custom_call.1} parent=104 // pred_region
          _
        $region109: #{tpu_custom_call.1} parent=104 // pred_fallthru
          _
        %s452 = sand.u32 %s36, 1
        %s453 = sand.u32 %s36, 1
        %s454 = smul.addr %s453, 16
        %s455 = scalar_lea.vmem [#allocation3], %s454
        %p456 = pneg %p49
        %p457 = pneg %p46
        %p458 = scmp.lt.s32.totalorder %s28, 2
        %s459 = scalar_select %p458, %s28, 2
        %s460 = smul.addr %s459, 2
        %s461 = scalar_lea.vmem %s1, %s460
        %p462 = pneg %p75
        %p463 = pneg %p72
        %p464 = scmp.lt.s32.totalorder %s28, 2
        %s465 = scalar_select %p464, %s28, 2
        %s466 = smul.addr %s465, 2
        %s467 = scalar_lea.vmem %s2, %s466
        %p468 = pneg %p101
        %p469 = pneg %p98
        %p470 = pneg %p122
        %p471 = pneg %p119
        %p472 = pneg %p143
        %p473 = pneg %p140
        %p474 = pneg %p164
        %p475 = pneg %p161
        %p476 = pneg %p185
        %p477 = pneg %p182
        %p478 = pneg %p206
        %p479 = pneg %p203
        %p480 = pneg %p227
        %p481 = pneg %p224
        %p482 = pneg %p248
        %p483 = pneg %p245
        %p484 = pneg %p269
        %p485 = pneg %p266
        %p486 = pneg %p290
        %p487 = pneg %p287
        %p488 = pneg %p316
        %p489 = pneg %p313
        %s490 = sand.u32 %s303, 1
        %s491 = scalar_lea.sflag [#allocation5], %s490
        %s492 = sand.u32 %s303, 1
        %s493 = scalar_lea.vmem [#allocation4], %s492
        %p494 = scmp.lt.s32.totalorder %s28, 2
        %s495 = scalar_select %p494, %s28, 2
        %s496 = smul.addr %s495, 2
        %s497 = scalar_lea.vmem %s1, %s496
        %p498 = scmp.lt.s32.totalorder %s28, 2
        %s499 = scalar_select %p498, %s28, 2
        %s500 = smul.addr %s499, 2
        %s501 = scalar_lea.vmem %s2, %s500
        %v502 = vld [vmem:[%s448] sm:$0xf]
        %v503 = vld [vmem:[%s448 + $0x4] sm:$0xf]
        %v504 = vld [vmem:[%s448 + $0x8] sm:$0xf]
        %v505 = vld [vmem:[%s448 + $0xc] sm:$0xf]
        %v506 = vunpack.c.l.bf16 %v502
        %v507 = vunpack.c.l.bf16 %v503
        %v508 = vunpack.c.l.bf16 %v504
        %v509 = vunpack.c.l.bf16 %v505
        %v510 = vld [vmem:[%s497] sm:$0x3]
        %v511 = vunpack.c.l.bf16 %v510
        %v512 = vld [vmem:[%s501] sm:$0x3]
        %v513 = vunpack.c.l.bf16 %v512
        %v514 = vtanh.pop %v513
        %v515 = vld [vmem:[%s5] sm:$0xff]
        %v516 = vld [vmem:[%s5 + $0x8] sm:$0xff]
        %v517 = vld [vmem:[%s5 + $0x10] sm:$0xff]
        %v518 = vld [vmem:[%s3] sm:$0xff]
        %v519 = vld [vmem:[%s3 + $0x8] sm:$0xff]
        %521 = vset.pattern.permute.xlu0 0
        %522 = vperm.xlu0 %521, %v515
        %v523 = vpop.permute.xlu0 %522
        %526 = vset.pattern.permute.xlu0 0
        %527 = vperm.xlu0 %526, %v516
        %v528 = vpop.permute.xlu0 %527
        %vm530 = vcmask 31744
        %v532 = vsel %vm530, %v518, 0
        %v535 = vsel %vm530, %v519, 0
        %vm537 = vcmask 1043456
        %v539 = vsel %vm537, %v511, 0
        %541 = vmatprep.subr.mxu0 0.0
        %542 = vmatpush1.msra.mxu0 0.0
        %543 = vmatprep.subr.mxu0 0.0
        %544 = vmatpush1.msra.mxu0 0.0
        %545 = vmatprep.subr.mxu0 0.0
        %546 = vmatpush1.msra.mxu0 0.0
        %547 = vmatprep.subr.mxu0 0.0
        %548 = vmatpush1.msra.mxu0 0.0
        %549 = vmatprep.subr.mxu0 0.0
        %550 = vmatpush1.msra.mxu0 0.0
        %551 = vmatprep.subr.mxu0 0.0
        %552 = vmatpush1.msra.mxu0 0.0
        %553 = vmatprep.subr.mxu0 0.0
        %554 = vmatpush1.msra.mxu0 0.0
        %555 = vmatprep.subr.mxu0 0.0
        %556 = vmatpush1.msra.mxu0 0.0
        %557 = vmatprep.subr.mxu0 0.0
        %558 = vmatpush1.msra.mxu0 0.0
        %559 = vmatprep.subr.mxu0 0.0
        %560 = vmatpush1.msra.mxu0 0.0
        %561 = vmatprep.subr.mxu0 0.0
        %562 = vmatpush1.msra.mxu0 0.0
        %563 = vmatprep.subr.mxu0 0.0
        %564 = vmatpush1.msra.mxu0 0.0
        %565 = vmatprep.subr.mxu0 0.0
        %566 = vmatpush1.msra.mxu0 0.0
        %567 = vmatprep.subr.mxu0 0.0
        %568 = vmatpush1.msra.mxu0 0.0
        %569 = vmatprep.subr.mxu0 0.0
        %570 = vmatpush1.msra.mxu0 0.0
        %571 = vmatprep.subr.mxu0 0.0
        %572 = vmatpush1.msra.mxu0 %v539
        %573 = vmatprep.subr.mxu0 0.0
        %574 = vmatpush2.msra.mxu0 0.0
        %575 = vmatprep.subr.mxu0 0.0
        %576 = vmatpush2.msra.mxu0 0.0
        %577 = vmatprep.subr.mxu0 0.0
        %578 = vmatpush2.msra.mxu0 0.0
        %579 = vmatprep.subr.mxu0 0.0
        %580 = vmatpush2.msra.mxu0 0.0
        %581 = vmatprep.subr.mxu0 0.0
        %582 = vmatpush2.msra.mxu0 0.0
        %583 = vmatprep.subr.mxu0 0.0
        %584 = vmatpush2.msra.mxu0 0.0
        %585 = vmatprep.subr.mxu0 0.0
        %586 = vmatpush2.msra.mxu0 0.0
        %587 = vmatprep.subr.mxu0 0.0
        %588 = vmatpush2.msra.mxu0 0.0
        %589 = vmatprep.subr.mxu0 0.0
        %590 = vmatpush2.msra.mxu0 0.0
        %591 = vmatprep.subr.mxu0 0.0
        %592 = vmatpush2.msra.mxu0 0.0
        %593 = vmatprep.subr.mxu0 0.0
        %594 = vmatpush2.msra.mxu0 0.0
        %595 = vmatprep.subr.mxu0 0.0
        %596 = vmatpush2.msra.mxu0 0.0
        %597 = vmatprep.subr.mxu0 0.0
        %598 = vmatpush2.msra.mxu0 0.0
        %599 = vmatprep.subr.mxu0 0.0
        %600 = vmatpush2.msra.mxu0 0.0
        %601 = vmatprep.subr.mxu0 0.0
        %602 = vmatpush2.msra.mxu0 0.0
        %603 = vmatprep.subr.mxu0 0.0
        %604 = vmatpush2.msra.mxu0 0.0
        %605 = vmatprep.mubr.f32.mxu0 0.0
        %606 = vmatmul.mubr.f32.gmra.mxu0 %v532
        %v607 = vpop.f32.mrf.mxu0
        %v608 = vadd.f32 %v523, %v607
        %v609 = vpop.f32.mrf.mxu0
        %610 = vmatprep.mubr.f32.mxu0 0.0
        %611 = vmatmul.mubr.f32.gmra.mxu0 %v535
        %v612 = vpop.f32.mrf.mxu0
        %v613 = vadd.f32 %v528, %v612
        %v614 = vpop.f32.mrf.mxu0
        %615 = vdwg.mxu0
        %v616 = vmax.f32 %v608, 0.0
        %v617 = vmax.f32 %v613, 0.0
        %v618 = vld [vmem:[%s4] sm:$0xff]
        %620 = vset.pattern.permute.xlu0 0
        %621 = vperm.xlu0 %620, %v517
        %v622 = vpop.permute.xlu0 %621
        %v625 = vsel %vm530, %v618, 0
        %v628 = vsel %vm537, %v514, 0
        %630 = vmatprep.subr.mxu0 0.0
        %631 = vmatpush1.msra.mxu0 0.0
        %632 = vmatprep.subr.mxu0 0.0
        %633 = vmatpush1.msra.mxu0 0.0
        %634 = vmatprep.subr.mxu0 0.0
        %635 = vmatpush1.msra.mxu0 0.0
        %636 = vmatprep.subr.mxu0 0.0
        %637 = vmatpush1.msra.mxu0 0.0
        %638 = vmatprep.subr.mxu0 0.0
        %639 = vmatpush1.msra.mxu0 0.0
        %640 = vmatprep.subr.mxu0 0.0
        %641 = vmatpush1.msra.mxu0 0.0
        %642 = vmatprep.subr.mxu0 0.0
        %643 = vmatpush1.msra.mxu0 0.0
        %644 = vmatprep.subr.mxu0 0.0
        %645 = vmatpush1.msra.mxu0 0.0
        %646 = vmatprep.subr.mxu0 0.0
        %647 = vmatpush1.msra.mxu0 0.0
        %648 = vmatprep.subr.mxu0 0.0
        %649 = vmatpush1.msra.mxu0 0.0
        %650 = vmatprep.subr.mxu0 0.0
        %651 = vmatpush1.msra.mxu0 0.0
        %652 = vmatprep.subr.mxu0 0.0
        %653 = vmatpush1.msra.mxu0 0.0
        %654 = vmatprep.subr.mxu0 0.0
        %655 = vmatpush1.msra.mxu0 0.0
        %656 = vmatprep.subr.mxu0 0.0
        %657 = vmatpush1.msra.mxu0 0.0
        %658 = vmatprep.subr.mxu0 0.0
        %659 = vmatpush1.msra.mxu0 0.0
        %660 = vmatprep.subr.mxu0 0.0
        %661 = vmatpush1.msra.mxu0 %v628
        %662 = vmatprep.subr.mxu0 0.0
        %663 = vmatpush2.msra.mxu0 0.0
        %664 = vmatprep.subr.mxu0 0.0
        %665 = vmatpush2.msra.mxu0 0.0
        %666 = vmatprep.subr.mxu0 0.0
        %667 = vmatpush2.msra.mxu0 0.0
        %668 = vmatprep.subr.mxu0 0.0
        %669 = vmatpush2.msra.mxu0 0.0
        %670 = vmatprep.subr.mxu0 0.0
        %671 = vmatpush2.msra.mxu0 0.0
        %672 = vmatprep.subr.mxu0 0.0
        %673 = vmatpush2.msra.mxu0 0.0
        %674 = vmatprep.subr.mxu0 0.0
        %675 = vmatpush2.msra.mxu0 0.0
        %676 = vmatprep.subr.mxu0 0.0
        %677 = vmatpush2.msra.mxu0 0.0
        %678 = vmatprep.subr.mxu0 0.0
        %679 = vmatpush2.msra.mxu0 0.0
        %680 = vmatprep.subr.mxu0 0.0
        %681 = vmatpush2.msra.mxu0 0.0
        %682 = vmatprep.subr.mxu0 0.0
        %683 = vmatpush2.msra.mxu0 0.0
        %684 = vmatprep.subr.mxu0 0.0
        %685 = vmatpush2.msra.mxu0 0.0
        %686 = vmatprep.subr.mxu0 0.0
        %687 = vmatpush2.msra.mxu0 0.0
        %688 = vmatprep.subr.mxu0 0.0
        %689 = vmatpush2.msra.mxu0 0.0
        %690 = vmatprep.subr.mxu0 0.0
        %691 = vmatpush2.msra.mxu0 0.0
        %692 = vmatprep.subr.mxu0 0.0
        %693 = vmatpush2.msra.mxu0 0.0
        %694 = vmatprep.mubr.f32.mxu0 0.0
        %695 = vmatmul.mubr.f32.gmra.mxu0 %v625
        %v696 = vpop.f32.mrf.mxu0
        %v697 = vadd.f32 %v622, %v696
        %v698 = vpop.f32.mrf.mxu0
        %699 = vdwg.mxu0
        %v700 = vmax.f32 %v697, 0.0
        %v701 = vld [vmem:[%s6] sm:$0xff]
        %v702 = vld [vmem:[%s6 + $0x8] sm:$0xff]
        %v703 = vld [vmem:[%s6 + $0x10] sm:$0xff]
        %v704 = vld [vmem:[%s6 + $0x18] sm:$0xff]
        %v705 = vld [vmem:[%s6 + $0x20] sm:$0xff]
        %v706 = vld [vmem:[%s6 + $0x28] sm:$0xff]
        %v707 = vld [vmem:[%s6 + $0x30] sm:$0xff]
        %v708 = vld [vmem:[%s6 + $0x38] sm:$0xff]
        %v709 = vld [vmem:[%s7] sm:$0xff]
        %v710 = vld [vmem:[%s7 + $0x8] sm:$0xff]
        %v711 = vld [vmem:[%s7 + $0x10] sm:$0xff]
        %v712 = vld [vmem:[%s7 + $0x18] sm:$0xff]
        %v713 = vld [vmem:[%s7 + $0x20] sm:$0xff]
        %v714 = vld [vmem:[%s7 + $0x28] sm:$0xff]
        %v715 = vld [vmem:[%s7 + $0x30] sm:$0xff]
        %v716 = vld [vmem:[%s7 + $0x38] sm:$0xff]
        %718 = vset.pattern.permute.xlu0 0
        %719 = vperm.xlu0 %718, %v709
        %v720 = vpop.permute.xlu0 %719
        %723 = vset.pattern.permute.xlu0 0
        %724 = vperm.xlu0 %723, %v710
        %v725 = vpop.permute.xlu0 %724
        %728 = vset.pattern.permute.xlu0 0
        %729 = vperm.xlu0 %728, %v711
        %v730 = vpop.permute.xlu0 %729
        %733 = vset.pattern.permute.xlu0 0
        %734 = vperm.xlu0 %733, %v712
        %v735 = vpop.permute.xlu0 %734
        %738 = vset.pattern.permute.xlu0 0
        %739 = vperm.xlu0 %738, %v713
        %v740 = vpop.permute.xlu0 %739
        %743 = vset.pattern.permute.xlu0 0
        %744 = vperm.xlu0 %743, %v714
        %v745 = vpop.permute.xlu0 %744
        %748 = vset.pattern.permute.xlu0 0
        %749 = vperm.xlu0 %748, %v715
        %v750 = vpop.permute.xlu0 %749
        %753 = vset.pattern.permute.xlu0 0
        %754 = vperm.xlu0 %753, %v716
        %v755 = vpop.permute.xlu0 %754
        %vm757 = vcmask 457728
        %v759 = vsel %vm757, %v701, 0
        %v762 = vsel %vm757, %v702, 0
        %v765 = vsel %vm757, %v703, 0
        %v768 = vsel %vm757, %v704, 0
        %v771 = vsel %vm757, %v705, 0
        %v774 = vsel %vm757, %v706, 0
        %v777 = vsel %vm757, %v707, 0
        %v780 = vsel %vm757, %v708, 0
        %782 = vmatprep.subr.mxu0 0.0
        %783 = vmatpush1.msra.mxu0 0.0
        %784 = vmatprep.subr.mxu0 0.0
        %785 = vmatpush1.msra.mxu0 0.0
        %786 = vmatprep.subr.mxu0 0.0
        %787 = vmatpush1.msra.mxu0 0.0
        %788 = vmatprep.subr.mxu0 0.0
        %789 = vmatpush1.msra.mxu0 0.0
        %790 = vmatprep.subr.mxu0 0.0
        %791 = vmatpush1.msra.mxu0 0.0
        %792 = vmatprep.subr.mxu0 0.0
        %793 = vmatpush1.msra.mxu0 0.0
        %794 = vmatprep.subr.mxu0 0.0
        %795 = vmatpush1.msra.mxu0 0.0
        %796 = vmatprep.subr.mxu0 0.0
        %797 = vmatpush1.msra.mxu0 0.0
        %798 = vmatprep.subr.mxu0 0.0
        %799 = vmatpush1.msra.mxu0 0.0
        %800 = vmatprep.subr.mxu0 0.0
        %801 = vmatpush1.msra.mxu0 %v700
        %802 = vmatprep.subr.mxu0 0.0
        %803 = vmatpush1.msra.mxu0 %v617
        %804 = vmatprep.subr.mxu0 0.0
        %805 = vmatpush1.msra.mxu0 %v616
        %806 = vmatprep.subr.mxu0 0.0
        %807 = vmatpush1.msra.mxu0 %v509
        %808 = vmatprep.subr.mxu0 0.0
        %809 = vmatpush1.msra.mxu0 %v508
        %810 = vmatprep.subr.mxu0 0.0
        %811 = vmatpush1.msra.mxu0 %v507
        %812 = vmatprep.subr.mxu0 0.0
        %813 = vmatpush1.msra.mxu0 %v506
        %814 = vmatprep.subr.mxu0 0.0
        %815 = vmatpush2.msra.mxu0 0.0
        %816 = vmatprep.subr.mxu0 0.0
        %817 = vmatpush2.msra.mxu0 0.0
        %818 = vmatprep.subr.mxu0 0.0
        %819 = vmatpush2.msra.mxu0 0.0
        %820 = vmatprep.subr.mxu0 0.0
        %821 = vmatpush2.msra.mxu0 0.0
        %822 = vmatprep.subr.mxu0 0.0
        %823 = vmatpush2.msra.mxu0 0.0
        %824 = vmatprep.subr.mxu0 0.0
        %825 = vmatpush2.msra.mxu0 0.0
        %826 = vmatprep.subr.mxu0 0.0
        %827 = vmatpush2.msra.mxu0 0.0
        %828 = vmatprep.subr.mxu0 0.0
        %829 = vmatpush2.msra.mxu0 0.0
        %830 = vmatprep.subr.mxu0 0.0
        %831 = vmatpush2.msra.mxu0 0.0
        %832 = vmatprep.subr.mxu0 0.0
        %833 = vmatpush2.msra.mxu0 0.0
        %834 = vmatprep.subr.mxu0 0.0
        %835 = vmatpush2.msra.mxu0 0.0
        %836 = vmatprep.subr.mxu0 0.0
        %837 = vmatpush2.msra.mxu0 0.0
        %838 = vmatprep.subr.mxu0 0.0
        %839 = vmatpush2.msra.mxu0 0.0
        %840 = vmatprep.subr.mxu0 0.0
        %841 = vmatpush2.msra.mxu0 0.0
        %842 = vmatprep.subr.mxu0 0.0
        %843 = vmatpush2.msra.mxu0 0.0
        %844 = vmatprep.subr.mxu0 0.0
        %845 = vmatpush2.msra.mxu0 0.0
        %846 = vmatprep.mubr.f32.mxu0 0.0
        %847 = vmatmul.mubr.f32.gmra.mxu0 %v759
        %v848 = vpop.f32.mrf.mxu0
        %v849 = vadd.f32 %v720, %v848
        %v850 = vpop.f32.mrf.mxu0
        %851 = vmatprep.mubr.f32.mxu0 0.0
        %852 = vmatmul.mubr.f32.gmra.mxu0 %v762
        %v853 = vpop.f32.mrf.mxu0
        %v854 = vadd.f32 %v725, %v853
        %v855 = vpop.f32.mrf.mxu0
        %856 = vmatprep.mubr.f32.mxu0 0.0
        %857 = vmatmul.mubr.f32.gmra.mxu0 %v765
        %v858 = vpop.f32.mrf.mxu0
        %v859 = vadd.f32 %v730, %v858
        %v860 = vpop.f32.mrf.mxu0
        %861 = vmatprep.mubr.f32.mxu0 0.0
        %862 = vmatmul.mubr.f32.gmra.mxu0 %v768
        %v863 = vpop.f32.mrf.mxu0
        %v864 = vadd.f32 %v735, %v863
        %v865 = vpop.f32.mrf.mxu0
        %866 = vmatprep.mubr.f32.mxu0 0.0
        %867 = vmatmul.mubr.f32.gmra.mxu0 %v771
        %v868 = vpop.f32.mrf.mxu0
        %v869 = vadd.f32 %v740, %v868
        %v870 = vpop.f32.mrf.mxu0
        %871 = vmatprep.mubr.f32.mxu0 0.0
        %872 = vmatmul.mubr.f32.gmra.mxu0 %v774
        %v873 = vpop.f32.mrf.mxu0
        %v874 = vadd.f32 %v745, %v873
        %v875 = vpop.f32.mrf.mxu0
        %876 = vmatprep.mubr.f32.mxu0 0.0
        %877 = vmatmul.mubr.f32.gmra.mxu0 %v777
        %v878 = vpop.f32.mrf.mxu0
        %v879 = vadd.f32 %v750, %v878
        %v880 = vpop.f32.mrf.mxu0
        %881 = vmatprep.mubr.f32.mxu0 0.0
        %882 = vmatmul.mubr.f32.gmra.mxu0 %v780
        %v883 = vpop.f32.mrf.mxu0
        %v884 = vadd.f32 %v755, %v883
        %v885 = vpop.f32.mrf.mxu0
        %886 = vdwg.mxu0
        %v887 = vmax.f32 %v849, 0.0
        %v888 = vmax.f32 %v854, 0.0
        %v889 = vmax.f32 %v859, 0.0
        %v890 = vmax.f32 %v864, 0.0
        %v891 = vmax.f32 %v869, 0.0
        %v892 = vmax.f32 %v874, 0.0
        %v893 = vmax.f32 %v879, 0.0
        %v894 = vmax.f32 %v884, 0.0
        %v895 = vld [vmem:[%s8] sm:$0xff]
        %v896 = vld [vmem:[%s8 + $0x8] sm:$0xff]
        %v897 = vld [vmem:[%s8 + $0x10] sm:$0xff]
        %v898 = vld [vmem:[%s8 + $0x18] sm:$0xff]
        %v899 = vld [vmem:[%s8 + $0x20] sm:$0xff]
        %v900 = vld [vmem:[%s8 + $0x28] sm:$0xff]
        %v901 = vld [vmem:[%s8 + $0x30] sm:$0xff]
        %v902 = vld [vmem:[%s8 + $0x38] sm:$0xff]
        %v903 = vld [vmem:[%s9] sm:$0xff]
        %v904 = vld [vmem:[%s9 + $0x8] sm:$0xff]
        %v905 = vld [vmem:[%s9 + $0x10] sm:$0xff]
        %v906 = vld [vmem:[%s9 + $0x18] sm:$0xff]
        %v907 = vld [vmem:[%s9 + $0x20] sm:$0xff]
        %v908 = vld [vmem:[%s9 + $0x28] sm:$0xff]
        %v909 = vld [vmem:[%s9 + $0x30] sm:$0xff]
        %v910 = vld [vmem:[%s9 + $0x38] sm:$0xff]
        %912 = vset.pattern.permute.xlu0 0
        %913 = vperm.xlu0 %912, %v903
        %v914 = vpop.permute.xlu0 %913
        %917 = vset.pattern.permute.xlu0 0
        %918 = vperm.xlu0 %917, %v904
        %v919 = vpop.permute.xlu0 %918
        %922 = vset.pattern.permute.xlu0 0
        %923 = vperm.xlu0 %922, %v905
        %v924 = vpop.permute.xlu0 %923
        %927 = vset.pattern.permute.xlu0 0
        %928 = vperm.xlu0 %927, %v906
        %v929 = vpop.permute.xlu0 %928
        %932 = vset.pattern.permute.xlu0 0
        %933 = vperm.xlu0 %932, %v907
        %v934 = vpop.permute.xlu0 %933
        %937 = vset.pattern.permute.xlu0 0
        %938 = vperm.xlu0 %937, %v908
        %v939 = vpop.permute.xlu0 %938
        %942 = vset.pattern.permute.xlu0 0
        %943 = vperm.xlu0 %942, %v909
        %v944 = vpop.permute.xlu0 %943
        %947 = vset.pattern.permute.xlu0 0
        %948 = vperm.xlu0 %947, %v910
        %v949 = vpop.permute.xlu0 %948
        %vm951 = vcmask 523264
        %v953 = vsel %vm951, %v895, 0
        %v956 = vsel %vm951, %v896, 0
        %v959 = vsel %vm951, %v897, 0
        %v962 = vsel %vm951, %v898, 0
        %v965 = vsel %vm951, %v899, 0
        %v968 = vsel %vm951, %v900, 0
        %v971 = vsel %vm951, %v901, 0
        %v974 = vsel %vm951, %v902, 0
        %976 = vmatprep.subr.mxu0 0.0
        %977 = vmatpush1.msra.mxu0 0.0
        %978 = vmatprep.subr.mxu0 0.0
        %979 = vmatpush1.msra.mxu0 0.0
        %980 = vmatprep.subr.mxu0 0.0
        %981 = vmatpush1.msra.mxu0 0.0
        %982 = vmatprep.subr.mxu0 0.0
        %983 = vmatpush1.msra.mxu0 0.0
        %984 = vmatprep.subr.mxu0 0.0
        %985 = vmatpush1.msra.mxu0 0.0
        %986 = vmatprep.subr.mxu0 0.0
        %987 = vmatpush1.msra.mxu0 0.0
        %988 = vmatprep.subr.mxu0 0.0
        %989 = vmatpush1.msra.mxu0 0.0
        %990 = vmatprep.subr.mxu0 0.0
        %991 = vmatpush1.msra.mxu0 0.0
        %992 = vmatprep.subr.mxu0 0.0
        %993 = vmatpush1.msra.mxu0 %v894
        %994 = vmatprep.subr.mxu0 0.0
        %995 = vmatpush1.msra.mxu0 %v893
        %996 = vmatprep.subr.mxu0 0.0
        %997 = vmatpush1.msra.mxu0 %v892
        %998 = vmatprep.subr.mxu0 0.0
        %999 = vmatpush1.msra.mxu0 %v891
        %1000 = vmatprep.subr.mxu0 0.0
        %1001 = vmatpush1.msra.mxu0 %v890
        %1002 = vmatprep.subr.mxu0 0.0
        %1003 = vmatpush1.msra.mxu0 %v889
        %1004 = vmatprep.subr.mxu0 0.0
        %1005 = vmatpush1.msra.mxu0 %v888
        %1006 = vmatprep.subr.mxu0 0.0
        %1007 = vmatpush1.msra.mxu0 %v887
        %1008 = vmatprep.subr.mxu0 0.0
        %1009 = vmatpush2.msra.mxu0 0.0
        %1010 = vmatprep.subr.mxu0 0.0
        %1011 = vmatpush2.msra.mxu0 0.0
        %1012 = vmatprep.subr.mxu0 0.0
        %1013 = vmatpush2.msra.mxu0 0.0
        %1014 = vmatprep.subr.mxu0 0.0
        %1015 = vmatpush2.msra.mxu0 0.0
        %1016 = vmatprep.subr.mxu0 0.0
        %1017 = vmatpush2.msra.mxu0 0.0
        %1018 = vmatprep.subr.mxu0 0.0
        %1019 = vmatpush2.msra.mxu0 0.0
        %1020 = vmatprep.subr.mxu0 0.0
        %1021 = vmatpush2.msra.mxu0 0.0
        %1022 = vmatprep.subr.mxu0 0.0
        %1023 = vmatpush2.msra.mxu0 0.0
        %1024 = vmatprep.subr.mxu0 0.0
        %1025 = vmatpush2.msra.mxu0 0.0
        %1026 = vmatprep.subr.mxu0 0.0
        %1027 = vmatpush2.msra.mxu0 0.0
        %1028 = vmatprep.subr.mxu0 0.0
        %1029 = vmatpush2.msra.mxu0 0.0
        %1030 = vmatprep.subr.mxu0 0.0
        %1031 = vmatpush2.msra.mxu0 0.0
        %1032 = vmatprep.subr.mxu0 0.0
        %1033 = vmatpush2.msra.mxu0 0.0
        %1034 = vmatprep.subr.mxu0 0.0
        %1035 = vmatpush2.msra.mxu0 0.0
        %1036 = vmatprep.subr.mxu0 0.0
        %1037 = vmatpush2.msra.mxu0 0.0
        %1038 = vmatprep.subr.mxu0 0.0
        %1039 = vmatpush2.msra.mxu0 0.0
        %1040 = vmatprep.mubr.f32.mxu0 0.0
        %1041 = vmatmul.mubr.f32.gmra.mxu0 %v953
        %v1042 = vpop.f32.mrf.mxu0
        %v1043 = vadd.f32 %v914, %v1042
        %v1044 = vpop.f32.mrf.mxu0
        %1045 = vmatprep.mubr.f32.mxu0 0.0
        %1046 = vmatmul.mubr.f32.gmra.mxu0 %v956
        %v1047 = vpop.f32.mrf.mxu0
        %v1048 = vadd.f32 %v919, %v1047
        %v1049 = vpop.f32.mrf.mxu0
        %1050 = vmatprep.mubr.f32.mxu0 0.0
        %1051 = vmatmul.mubr.f32.gmra.mxu0 %v959
        %v1052 = vpop.f32.mrf.mxu0
        %v1053 = vadd.f32 %v924, %v1052
        %v1054 = vpop.f32.mrf.mxu0
        %1055 = vmatprep.mubr.f32.mxu0 0.0
        %1056 = vmatmul.mubr.f32.gmra.mxu0 %v962
        %v1057 = vpop.f32.mrf.mxu0
        %v1058 = vadd.f32 %v929, %v1057
        %v1059 = vpop.f32.mrf.mxu0
        %1060 = vmatprep.mubr.f32.mxu0 0.0
        %1061 = vmatmul.mubr.f32.gmra.mxu0 %v965
        %v1062 = vpop.f32.mrf.mxu0
        %v1063 = vadd.f32 %v934, %v1062
        %v1064 = vpop.f32.mrf.mxu0
        %1065 = vmatprep.mubr.f32.mxu0 0.0
        %1066 = vmatmul.mubr.f32.gmra.mxu0 %v968
        %v1067 = vpop.f32.mrf.mxu0
        %v1068 = vadd.f32 %v939, %v1067
        %v1069 = vpop.f32.mrf.mxu0
        %1070 = vmatprep.mubr.f32.mxu0 0.0
        %1071 = vmatmul.mubr.f32.gmra.mxu0 %v971
        %v1072 = vpop.f32.mrf.mxu0
        %v1073 = vadd.f32 %v944, %v1072
        %v1074 = vpop.f32.mrf.mxu0
        %1075 = vmatprep.mubr.f32.mxu0 0.0
        %1076 = vmatmul.mubr.f32.gmra.mxu0 %v974
        %v1077 = vpop.f32.mrf.mxu0
        %v1078 = vadd.f32 %v949, %v1077
        %v1079 = vpop.f32.mrf.mxu0
        %1080 = vdwg.mxu0
        %v1081 = vmax.f32 %v1043, 0.0
        %v1082 = vmax.f32 %v1048, 0.0
        %v1083 = vmax.f32 %v1053, 0.0
        %v1084 = vmax.f32 %v1058, 0.0
        %v1085 = vmax.f32 %v1063, 0.0
        %v1086 = vmax.f32 %v1068, 0.0
        %v1087 = vmax.f32 %v1073, 0.0
        %v1088 = vmax.f32 %v1078, 0.0
        %v1089 = vld [vmem:[%s10] sm:$0xff]
        %v1090 = vld [vmem:[%s10 + $0x8] sm:$0xff]
        %v1091 = vld [vmem:[%s10 + $0x10] sm:$0xff]
        %v1092 = vld [vmem:[%s10 + $0x18] sm:$0xff]
        %v1093 = vld [vmem:[%s10 + $0x20] sm:$0xff]
        %v1094 = vld [vmem:[%s10 + $0x28] sm:$0xff]
        %v1095 = vld [vmem:[%s10 + $0x30] sm:$0xff]
        %v1096 = vld [vmem:[%s10 + $0x38] sm:$0xff]
        %1098 = vset.pattern.permute.xlu0 0
        %1099 = vperm.xlu0 %1098, %v1089
        %v1100 = vpop.permute.xlu0 %1099
        %1103 = vset.pattern.permute.xlu0 0
        %1104 = vperm.xlu0 %1103, %v1090
        %v1105 = vpop.permute.xlu0 %1104
        %1108 = vset.pattern.permute.xlu0 0
        %1109 = vperm.xlu0 %1108, %v1091
        %v1110 = vpop.permute.xlu0 %1109
        %1113 = vset.pattern.permute.xlu0 0
        %1114 = vperm.xlu0 %1113, %v1092
        %v1115 = vpop.permute.xlu0 %1114
        %1118 = vset.pattern.permute.xlu0 0
        %1119 = vperm.xlu0 %1118, %v1093
        %v1120 = vpop.permute.xlu0 %1119
        %1123 = vset.pattern.permute.xlu0 0
        %1124 = vperm.xlu0 %1123, %v1094
        %v1125 = vpop.permute.xlu0 %1124
        %1128 = vset.pattern.permute.xlu0 0
        %1129 = vperm.xlu0 %1128, %v1095
        %v1130 = vpop.permute.xlu0 %1129
        %1133 = vset.pattern.permute.xlu0 0
        %1134 = vperm.xlu0 %1133, %v1096
        %v1135 = vpop.permute.xlu0 %1134
        %v1137 = vmul.f32 %v1081, %v1100
        %v1138 = vmul.f32 %v1082, %v1105
        %v1139 = vmul.f32 %v1083, %v1110
        %v1140 = vmul.f32 %v1084, %v1115
        %v1141 = vmul.f32 %v1085, %v1120
        %v1142 = vmul.f32 %v1086, %v1125
        %v1143 = vmul.f32 %v1087, %v1130
        %v1144 = vmul.f32 %v1088, %v1135
        %v1145 = vadd.f32 %v1137, %v1138
        %v1146 = vadd.f32 %v1145, %v1139
        %v1147 = vadd.f32 %v1146, %v1140
        %v1148 = vadd.f32 %v1147, %v1141
        %v1149 = vadd.f32 %v1148, %v1142
        %v1150 = vadd.f32 %v1149, %v1143
        %v1151 = vadd.f32 %v1150, %v1144
        %v1152 = vrot.slane %v1151, 4
        %v1153 = vadd.f32 %v1151, %v1152
        %v1154 = vrot.slane %v1153, 2
        %v1155 = vadd.f32 %v1153, %v1154
        %v1156 = vrot.slane %v1155, 1
        %v1157 = vadd.f32 %v1155, %v1156
        %v1158 = vld [vmem:[#allocation2] sm:$0x1]
        %1160 = vset.pattern.permute.xlu0 0
        %1161 = vperm.xlu0 %1160, %v1158
        %v1162 = vpop.permute.xlu0 %1161
        %v1164 = vlaneseq
        %v1165 = vshrl.u32 %v1164, 7
        %v1166 = vsub.s32 0, %v1165
        %v1167 = vrot.slane %v1162, %v1166
        %v1168 = vadd.f32 %v1157, %v1167
        %1169 = vst [vmem:[%s493] sm:$0x1] %v1168
        %s1170 = sand.u32 %s303, 1
        %s1171 = scalar_lea.sflag [#allocation5], %s1170
        %s1172 = sand.u32 %s303, 1
        %s1173 = scalar_lea.vmem [#allocation4], %s1172
        // Predicated region
        $region110: #{tpu_custom_call.1} parent=104 // pred_check
          %p1174 = pneg %p313
        $region111: #{tpu_custom_call.1} parent=104 // pred_check_branch
          %1176 = sbr.rel (%p1174) target = $region113
        $region112: #{tpu_custom_call.1} parent=104 // pred_region
          %s1178 = ssub.s32 16, 16
          %1179 = vsyncadd %s1171, %s1178
          %s1180 = smul.addr %s28, 16
          %s1181 = scalar_lea.hbm %s12, %s1180
          %s1183 = sshll.u32 %s1173, 4
          %s1184 = int_to_ptr.vmem [resolvable:$true] %s1183
          %1186 = dma.vmem_to_hbm [thread:$0]  %s1184, 16, %s1181, %s1171
        $region113: #{tpu_custom_call.1} parent=104 // pred_fallthru
          _
      $region105: #{tpu_custom_call.1} parent=5 // pred_fallthru
        _
      %p1187 = scmp.le.s32.totalorder 2, %s23
      // Predicated region
      $region114: #{tpu_custom_call.1} parent=5 // pred_check
        %p1188 = pneg %p1187
      $region115: #{tpu_custom_call.1} parent=5 // pred_check_branch
        %1190 = sbr.rel (%p1188) target = $region117
      $region116: #{tpu_custom_call.1} parent=5 // pred_region
        %s1191 = ssub.s32 %s23, 2
        // Predicated region
        $region118: #{tpu_custom_call.1} parent=116 // pred_check
          %p1192 = pneg %p319
        $region119: #{tpu_custom_call.1} parent=116 // pred_check_branch
          %1194 = sbr.rel (%p1192) target = $region121
        $region120: #{tpu_custom_call.1} parent=116 // pred_region
          %s1195 = sand.u32 %s304, 1
          %s1196 = scalar_lea.sflag [#allocation5], %s1195
          %s1197 = sand.u32 %s304, 1
          %s1198 = scalar_lea.vmem [#allocation4], %s1197
          %1199 = dma.done %s1196, 16
        $region121: #{tpu_custom_call.1} parent=116 // pred_fallthru
          _
      $region117: #{tpu_custom_call.1} parent=5 // pred_fallthru
        _
    $region6: #{tpu_custom_call.1} parent=1 // loop_footer
      %s27 = sadd.s32 1, %s23
    $region7: #{tpu_custom_call.1} parent=1 // loop_footer_branch
      %22 = sbr.rel target = $region3
    $region8: #{tpu_custom_call.1} parent=1 // loop_exit
      _
    %1200 = vsyncpa [#allocation5], 1
    %s1201 = scalar_lea.sflag [#allocation5], 1
    %1202 = vsyncpa %s1201, 1

</llo_original>
